<compile_context>
chip_gen: v5e
topology: v5e:2x2
jax: 0.10.0
libtpu: 0.0.40
codegen_flags: <defaults>
</compile_context>

<pallas_src>
import jax
import jax.numpy as jnp
from jax import lax
from jax.experimental import pallas as pl
from jax.experimental.pallas import tpu as pltpu

_LANE = 128
_SUBLANE = 8
_CONTRACT_LAST = (((1,), (1,)), ((), ()))   # A @ B.T without materializing .T
_VMEM_BUDGET = 24 << 20                     # bytes; leave headroom under 32 MiB


def _fused_decoder_kernel(zin_ref, w_ref, b_ref, zall_ref, out_ref):
    # zin_ref : [B_pad, H]       gathered (row-padded) author embeddings
    # w_ref   : [H, H]           Linear weight, PyTorch layout [out, in]
    # b_ref   : [1, H]           Linear bias
    # zall_ref: [TILE_N, H]      one tile of the concatenated candidate slab
    # out_ref : [B_pad, TILE_N]  sigmoid scores for this candidate tile
    q = lax.dot_general(zin_ref[...], w_ref[...], _CONTRACT_LAST,
                        preferred_element_type=jnp.float32)
    q = q + b_ref[...].astype(jnp.float32)
    s = lax.dot_general(q.astype(zall_ref.dtype), zall_ref[...], _CONTRACT_LAST,
                        preferred_element_type=jnp.float32)
    out_ref[...] = jax.nn.sigmoid(s).astype(out_ref.dtype)


def _round_up(x, m):
    return ((x + m - 1) // m) * m


def _pick_tile_n(n_total, hidden, b_rows, itemsize):
    """Largest 128-multiple candidate tile that fits the VMEM budget
    (resident operands + double-buffered streamed input and output)."""
    resident = (b_rows * hidden + hidden * hidden + hidden) * itemsize
    per_lane = 2 * _LANE * (hidden * itemsize + b_rows * 4)  # in + f32 out, 2x buf
    max_lanes = max(1, (_VMEM_BUDGET - resident) // max(per_lane, 1))
    tile_n = min(int(max_lanes) * _LANE, 2048, _round_up(n_total, _LANE))
    return max(_LANE, tile_n)


@jax.jit
def node_decoder_forward(z_dict, input_nodes, w, b):
    """JAX/Pallas equivalent of NodeDecoder.forward (one fused kernel)."""
    z_author = z_dict["author"]
    z_topic = z_dict["topic"]
    z_paper = z_dict["paper"]
    H = z_author.shape[1]

    # Row gather stays as cheap XLA glue.
    # TODO(synk): fold the gather into the kernel via PrefetchScalarGridSpec +
    # pl.Element row blocks if B becomes large.
    z_input = z_author[input_nodes]                       # [B, H]
    B = z_input.shape[0]

    n_author, n_topic, n_paper = (z_author.shape[0], z_topic.shape[0],
                                  z_paper.shape[0])
    n_total = n_author + n_topic + n_paper

    # Pad query batch to a sublane multiple.
    b_rows = _round_up(B, _SUBLANE)
    z_in = jnp.pad(z_input, ((0, b_rows - B), (0, 0)))

    # Lane-dense, tile-aligned candidate slab.
    tile_n = _pick_tile_n(n_total, H, b_rows, z_author.dtype.itemsize)
    n_pad = _round_up(n_total, tile_n)
    z_all = jnp.concatenate([z_author, z_topic, z_paper], axis=0)
    z_all = jnp.pad(z_all, ((0, n_pad - n_total), (0, 0)))

    b2d = b.reshape(1, H)

    scores = pl.pallas_call(
        _fused_decoder_kernel,
        out_shape=jax.ShapeDtypeStruct((b_rows, n_pad), jnp.float32),
        grid_spec=pltpu.PrefetchScalarGridSpec(
            num_scalar_prefetch=0,
            grid=(n_pad // tile_n,),
            in_specs=[
                pl.BlockSpec((b_rows, H), lambda j: (0, 0)),   # resident
                pl.BlockSpec((H, H), lambda j: (0, 0)),        # resident
                pl.BlockSpec((1, H), lambda j: (0, 0)),        # resident
                pl.BlockSpec((tile_n, H), lambda j: (j, 0)),   # streamed over N
            ],
            out_specs=pl.BlockSpec((b_rows, tile_n), lambda j: (0, j)),
        ),
        compiler_params=pltpu.CompilerParams(
            dimension_semantics=("parallel",),
        ),
    )(z_in, w, b2d, z_all)

    scores = scores[:B]
    return {
        "author": scores[:, :n_author],
        "topic": scores[:, n_author:n_author + n_topic],
        "paper": scores[:, n_author + n_topic:n_author + n_topic + n_paper],
    }


if __name__ == "__main__":
    key = jax.random.PRNGKey(0)
    H = 32            # hidden_channels
    N_AUTHOR = 16
    N_TOPIC = 24
    N_PAPER = 32
    B = 8             # number of query (input) author nodes

    k1, k2, k3, k4, k5 = jax.random.split(key, 5)
    z_dict = {
        "author": jax.random.normal(k1, (N_AUTHOR, H), dtype=jnp.float32),
        "topic": jax.random.normal(k2, (N_TOPIC, H), dtype=jnp.float32),
        "paper": jax.random.normal(k3, (N_PAPER, H), dtype=jnp.float32),
    }
    input_nodes = jnp.array([0, 3, 5, 7, 2, 1, 9, 11], dtype=jnp.int32)

    # PyTorch-style Linear(H, H) params: W [out, in], b [out].
    bound = 1.0 / (H ** 0.5)
    w = jax.random.uniform(k4, (H, H), minval=-bound, maxval=bound,
                           dtype=jnp.float32)
    b = jax.random.uniform(k5, (H,), minval=-bound, maxval=bound,
                           dtype=jnp.float32)

    out = node_decoder_forward(z_dict, input_nodes, w, b)
    jax.block_until_ready(out)

    # Correctness check vs. plain-JAX reference.
    z_in = z_dict["author"][input_nodes]
    q_ref = z_in @ w.T + b
    for name in ("author", "topic", "paper"):
        ref = jax.nn.sigmoid(q_ref @ z_dict[name].T)
        assert out[name].shape == ref.shape, name
        assert jnp.allclose(out[name], ref, atol=1e-5), name

    print("KERNEL_OK")
</pallas_src>

<mosaic_0001>
module attributes {stable_mosaic.version = 11 : i64} {
  func.func @_fused_decoder_kernel(%arg0: i32, %arg1: memref<8x32xf32, #tpu.memory_space<vmem>>, %arg2: memref<32x32xf32, #tpu.memory_space<vmem>>, %arg3: memref<1x32xf32, #tpu.memory_space<vmem>>, %arg4: memref<128x32xf32, #tpu.memory_space<vmem>>, %arg5: memref<8x128xf32, #tpu.memory_space<vmem>>) attributes {dimension_semantics = [#tpu.dimension_semantics<parallel>], iteration_bounds = array<i64: 1>, scalar_prefetch = 0 : i64, scratch_operands = 0 : i64, tpu.core_type = #tpu.core_type<tc>, window_params = [{pipeline_mode = #tpu.pipeline_mode<synchronous>, transform_indices = @transform_0, window_bounds = array<i64: 8, 32>}, {pipeline_mode = #tpu.pipeline_mode<synchronous>, transform_indices = @transform_1, window_bounds = array<i64: 32, 32>}, {pipeline_mode = #tpu.pipeline_mode<synchronous>, transform_indices = @transform_2, window_bounds = array<i64: 1, 32>}, {transform_indices = @transform_3, window_bounds = array<i64: 128, 32>}, {transform_indices = @transform_4, window_bounds = array<i64: 8, 128>}]} {
    %c0 = arith.constant 0 : index
    %c0_0 = arith.constant 0 : index
    %0 = vector.load %arg1[%c0, %c0_0] : memref<8x32xf32, #tpu.memory_space<vmem>>, vector<8x32xf32>
    %c0_1 = arith.constant 0 : index
    %c0_2 = arith.constant 0 : index
    %1 = vector.load %arg2[%c0_1, %c0_2] : memref<32x32xf32, #tpu.memory_space<vmem>>, vector<32x32xf32>
    %cst = arith.constant dense<0.000000e+00> : vector<8x32xf32>
    %2 = tpu.matmul %0, %1, %cst {dimension_numbers = #tpu.dot_dimension_numbers<[1], [1], [0], [0], [0, 0, 1, 0], [], []>} : vector<8x32xf32>, vector<32x32xf32>, vector<8x32xf32> -> vector<8x32xf32>
    %c0_3 = arith.constant 0 : index
    %c0_4 = arith.constant 0 : index
    %3 = vector.load %arg3[%c0_3, %c0_4] : memref<1x32xf32, #tpu.memory_space<vmem>>, vector<1x32xf32>
    %4 = vector.broadcast %3 : vector<1x32xf32> to vector<8x32xf32>
    %5 = arith.addf %2, %4 : vector<8x32xf32>
    %c0_5 = arith.constant 0 : index
    %c0_6 = arith.constant 0 : index
    %6 = vector.load %arg4[%c0_5, %c0_6] : memref<128x32xf32, #tpu.memory_space<vmem>>, vector<128x32xf32>
    %cst_7 = arith.constant dense<0.000000e+00> : vector<8x128xf32>
    %7 = tpu.matmul %5, %6, %cst_7 {dimension_numbers = #tpu.dot_dimension_numbers<[1], [1], [0], [0], [0, 0, 1, 0], [], []>} : vector<8x32xf32>, vector<128x32xf32>, vector<8x128xf32> -> vector<8x128xf32>
    %8 = arith.negf %7 : vector<8x128xf32>
    %9 = math.exp %8 : vector<8x128xf32>
    %cst_8 = arith.constant 1.000000e+00 : f32
    %10 = vector.broadcast %cst_8 : f32 to vector<8x128xf32>
    %11 = arith.addf %10, %9 : vector<8x128xf32>
    %12 = arith.divf %10, %11 : vector<8x128xf32>
    %c0_9 = arith.constant 0 : index
    %c0_10 = arith.constant 0 : index
    %13 = vector.load %arg5[%c0_9, %c0_10] : memref<8x128xf32, #tpu.memory_space<vmem>>, vector<8x128xf32>
    tpu.vector_store %arg5[%c0_9, %c0_10], %12 {strides = array<i32>} : memref<8x128xf32, #tpu.memory_space<vmem>>, vector<8x128xf32>,
    return
  }
  func.func @transform_0(%arg0: i32) -> (i32, i32) {
    %c0_i32 = arith.constant 0 : i32
    %c0_i32_0 = arith.constant 0 : i32
    %c0_i32_1 = arith.constant 0 : i32
    return %c0_i32, %c0_i32_0 : i32, i32
  }
  func.func @transform_1(%arg0: i32) -> (i32, i32) {
    %c0_i32 = arith.constant 0 : i32
    %c0_i32_0 = arith.constant 0 : i32
    %c0_i32_1 = arith.constant 0 : i32
    return %c0_i32, %c0_i32_0 : i32, i32
  }
  func.func @transform_2(%arg0: i32) -> (i32, i32) {
    %c0_i32 = arith.constant 0 : i32
    %c0_i32_0 = arith.constant 0 : i32
    %c0_i32_1 = arith.constant 0 : i32
    return %c0_i32, %c0_i32_0 : i32, i32
  }
  func.func @transform_3(%arg0: i32) -> (i32, i32) {
    %c0_i32 = arith.constant 0 : i32
    %c0_i32_0 = arith.constant 0 : i32
    return %arg0, %c0_i32 : i32, i32
  }
  func.func @transform_4(%arg0: i32) -> (i32, i32) {
    %c0_i32 = arith.constant 0 : i32
    %c0_i32_0 = arith.constant 0 : i32
    return %c0_i32, %arg0 : i32, i32
  }
}

</mosaic_0001>

<llo_original>
// kernel: node_decoder_forward.1
$region0: #{node_decoder_forward.1}
  #allocation0 [shape = 'u32[]', space=smem, size = 0x4, offset = 0x4, fixed_abs, tag = 'smem constant byte address 0x4 - core index']
  #allocation1 [shape = 'u32[72,128]{1,0:T(1,128)}', space=vmem, size = 0x9000, scoped, tag = 'internal scratch']
  %s0 = inlined_call_operand.vmem [shape: f32[8,32], index: 0, kind: input, shape index: {}]
  %s1 = inlined_call_operand.vmem [shape: f32[32,32], index: 1, kind: input, shape index: {}]
  %s2 = inlined_call_operand.vmem [shape: f32[1,32], index: 2, kind: input, shape index: {}]
  %s3 = inlined_call_operand.vmem [shape: f32[128,32], index: 3, kind: input, shape index: {}]
  %s4 = inlined_call_operand.vmem [shape: f32[8,128], index: 4, kind: output, shape index: {}]
  %s5 = sld [smem:[#allocation0]]
  $region26: #{node_decoder_forward.1} parent=0
    _
  %s7 = ssub.s32 1, %s5
  %s8 = scalar_select 0, %s7, %s5
  // Predicated region
  $region2: #{node_decoder_forward.1} parent=0 // pred_check
    _
  $region3: #{node_decoder_forward.1} parent=0 // pred_check_branch
    %10 = sbr.rel (0) target = $region5
  $region4: #{node_decoder_forward.1} parent=0 // pred_region
    _
  $region5: #{node_decoder_forward.1} parent=0 // pred_fallthru
    _
  // Predicated region
  $region6: #{node_decoder_forward.1} parent=0 // pred_check
    _
  $region7: #{node_decoder_forward.1} parent=0 // pred_check_branch
    %12 = sbr.rel (0) target = $region9
  $region8: #{node_decoder_forward.1} parent=0 // pred_region
    _
  $region9: #{node_decoder_forward.1} parent=0 // pred_fallthru
    _
  // Predicated region
  $region10: #{node_decoder_forward.1} parent=0 // pred_check
    _
  $region11: #{node_decoder_forward.1} parent=0 // pred_check_branch
    %14 = sbr.rel (0) target = $region13
  $region12: #{node_decoder_forward.1} parent=0 // pred_region
    _
  $region13: #{node_decoder_forward.1} parent=0 // pred_fallthru
    _
  // Predicated region
  $region14: #{node_decoder_forward.1} parent=0 // pred_check
    _
  $region15: #{node_decoder_forward.1} parent=0 // pred_check_branch
    %16 = sbr.rel (0) target = $region17
  $region16: #{node_decoder_forward.1} parent=0 // pred_region
    _
  $region17: #{node_decoder_forward.1} parent=0 // pred_fallthru
    _
  %v17 = vld [vmem:[%s0] sm:$0xff]
  %v18 = vld [vmem:[%s1] sm:$0xff]
  %v19 = vld [vmem:[%s1 + $0x8] sm:$0xff]
  %v20 = vld [vmem:[%s1 + $0x10] sm:$0xff]
  %v21 = vld [vmem:[%s1 + $0x18] sm:$0xff]
  %v22 = vld [vmem:[%s2] sm:$0x1]
  %v24 = vperm.slane %v22, 0
  %vm26 = vcmask 261120
  %v28 = vsel %vm26, %v17, 0
  %v31 = vsel %vm26, %v18, 0
  %v34 = vsel %vm26, %v19, 0
  %v37 = vsel %vm26, %v20, 0
  %v40 = vsel %vm26, %v21, 0
  %42 = vmatpush.xpose.msra.mxu0 0.0
  %43 = vmatpush.xpose.msra.mxu0 0.0
  %44 = vmatpush.xpose.msra.mxu0 0.0
  %45 = vmatpush.xpose.msra.mxu0 0.0
  %46 = vmatpush.xpose.msra.mxu0 0.0
  %47 = vmatpush.xpose.msra.mxu0 0.0
  %48 = vmatpush.xpose.msra.mxu0 0.0
  %49 = vmatpush.xpose.msra.mxu0 0.0
  %50 = vmatpush.xpose.msra.mxu0 0.0
  %51 = vmatpush.xpose.msra.mxu0 0.0
  %52 = vmatpush.xpose.msra.mxu0 0.0
  %53 = vmatpush.xpose.msra.mxu0 0.0
  %54 = vmatpush.xpose.msra.mxu0 %v40
  %55 = vmatpush.xpose.msra.mxu0 %v37
  %56 = vmatpush.xpose.msra.mxu0 %v34
  %57 = vmatpush.xpose.msra.mxu0 %v31
  %58 = vmatmul.f32.gmra.mxu0 %v28
  %v59 = vpop.f32.mrf.mxu0
  %v60 = vadd.f32 %v24, %v59
  %61 = vdwg.mxu0
  %v62 = vld [vmem:[%s3] sm:$0xff]
  %v63 = vld [vmem:[%s3 + $0x8] sm:$0xff]
  %v64 = vld [vmem:[%s3 + $0x10] sm:$0xff]
  %v65 = vld [vmem:[%s3 + $0x18] sm:$0xff]
  %v66 = vld [vmem:[%s3 + $0x20] sm:$0xff]
  %v67 = vld [vmem:[%s3 + $0x28] sm:$0xff]
  %v68 = vld [vmem:[%s3 + $0x30] sm:$0xff]
  %v69 = vld [vmem:[%s3 + $0x38] sm:$0xff]
  %v70 = vld [vmem:[%s3 + $0x40] sm:$0xff]
  %v71 = vld [vmem:[%s3 + $0x48] sm:$0xff]
  %v72 = vld [vmem:[%s3 + $0x50] sm:$0xff]
  %v73 = vld [vmem:[%s3 + $0x58] sm:$0xff]
  %v74 = vld [vmem:[%s3 + $0x60] sm:$0xff]
  %v75 = vld [vmem:[%s3 + $0x68] sm:$0xff]
  %v76 = vld [vmem:[%s3 + $0x70] sm:$0xff]
  %v77 = vld [vmem:[%s3 + $0x78] sm:$0xff]
  %v79 = vsel %vm26, %v60, 0
  %v82 = vsel %vm26, %v62, 0
  %v85 = vsel %vm26, %v63, 0
  %v88 = vsel %vm26, %v64, 0
  %v91 = vsel %vm26, %v65, 0
  %v94 = vsel %vm26, %v66, 0
  %v97 = vsel %vm26, %v67, 0
  %v100 = vsel %vm26, %v68, 0
  %v103 = vsel %vm26, %v69, 0
  %v106 = vsel %vm26, %v70, 0
  %v109 = vsel %vm26, %v71, 0
  %v112 = vsel %vm26, %v72, 0
  %v115 = vsel %vm26, %v73, 0
  %v118 = vsel %vm26, %v74, 0
  %v121 = vsel %vm26, %v75, 0
  %v124 = vsel %vm26, %v76, 0
  %v127 = vsel %vm26, %v77, 0
  %129 = vmatpush.xpose.msra.mxu0 %v127
  %130 = vmatpush.xpose.msra.mxu0 %v124
  %131 = vmatpush.xpose.msra.mxu0 %v121
  %132 = vmatpush.xpose.msra.mxu0 %v118
  %133 = vmatpush.xpose.msra.mxu0 %v115
  %134 = vmatpush.xpose.msra.mxu0 %v112
  %135 = vmatpush.xpose.msra.mxu0 %v109
  %136 = vmatpush.xpose.msra.mxu0 %v106
  %137 = vmatpush.xpose.msra.mxu0 %v103
  %138 = vmatpush.xpose.msra.mxu0 %v100
  %139 = vmatpush.xpose.msra.mxu0 %v97
  %140 = vmatpush.xpose.msra.mxu0 %v94
  %141 = vmatpush.xpose.msra.mxu0 %v91
  %142 = vmatpush.xpose.msra.mxu0 %v88
  %143 = vmatpush.xpose.msra.mxu0 %v85
  %144 = vmatpush.xpose.msra.mxu0 %v82
  %145 = vmatmul.f32.gmra.mxu0 %v79
  %v146 = vpop.f32.mrf.mxu0
  %v147 = vadd.f32 0.0, %v146
  %148 = vdwg.mxu0
  %v149 = vxor.u32 %v147, 2147483648
  %v150 = vmul.f32 %v149, 1.442695
  %v151 = vpow.pop %v150
  %v152 = vadd.f32 %v151, 1.0
  %v153 = vrcp.pop %v152
  %v154 = vmul.f32 %v152, %v153
  %v155 = vsub.f32 1.0, %v154
  %v156 = vmul.f32 %v153, %v155
  %v157 = vadd.f32 %v153, %v156
  %vm158 = vweird.f32 %v152
  %vm159 = vweird.f32 %v153
  %vm160 = vmor %vm158, %vm159
  %v161 = vsel %vm160, %v153, %v157
  %v162 = vand.u32 2147483647, %v152
  %vm163 = vcmp.eq.f32.partialorder %v162, 8.507059e+37
  %v164 = vand.u32 %v152, 2147483648
  %v165 = vor.u32 1.1754944e-38, %v164
  %v166 = vsel %vm163, %v165, %v161
  %v167 = vmul.f32 1.0, %v166
  %168 = vst [vmem:[%s4] sm:$0xff] %v167
  // Predicated region
  $region18: #{node_decoder_forward.1} parent=0 // pred_check
    _
  $region19: #{node_decoder_forward.1} parent=0 // pred_check_branch
    %170 = sbr.rel (0) target = $region21
  $region20: #{node_decoder_forward.1} parent=0 // pred_region
    _
  $region21: #{node_decoder_forward.1} parent=0 // pred_fallthru
    _
  // Predicated region
  $region22: #{node_decoder_forward.1} parent=0 // pred_check
    _
  $region23: #{node_decoder_forward.1} parent=0 // pred_check_branch
    %172 = sbr.rel (0) target = $region25
  $region24: #{node_decoder_forward.1} parent=0 // pred_region
    _
  $region25: #{node_decoder_forward.1} parent=0 // pred_fallthru
    _

</llo_original>
